<compile_context>
chip_gen: v7x
topology: tpu7x:2x2x1
jax: 0.10.0
libtpu: 0.0.40
codegen_flags: <defaults>
</compile_context>

<pallas_src>
import functools

import jax
import jax.numpy as jnp
from jax import lax
from jax.experimental import pallas as pl
from jax.experimental.pallas import tpu as pltpu

_EPS = 1e-5
_VMEM_LIMIT = 32 * 1024 * 1024        # scoped-VMEM budget (fits v7x's 64 MiB physical)
_TILE_BYTES_BUDGET = 2 * 1024 * 1024  # per row tile; ~4 tiles live with double buffering
_SMALL_FUSED_BYTES = 1 * 1024 * 1024  # below this (f32 bytes), use the fused single-tile kernel
_MAX_TILE_ROWS = 2048


def _fold_replicas(v, fold, d):
    """Sum the `fold` lane-replicas of each feature in a (1, fold*d) row.

    After the rotate-adds every lane j holds the total for feature (j % d),
    i.e. the folded per-feature reduction already broadcast back to all
    replica positions.  pltpu.roll uses the XLU slot (essentially free).
    """
    total = v
    for k in range(1, fold):
        total = total + pltpu.roll(v, shift=k * d, axis=1)
    return total


def _fused_kernel(x_ref, gamma_ref, beta_ref, o_ref, *, fold, d, inv_m, eps):
    # Whole (folded) array resident in VMEM: centered (more accurate) variance.
    x = x_ref[...].astype(jnp.float32)                                  # (Mf, Dp)
    mean = _fold_replicas(jnp.sum(x, axis=0, keepdims=True), fold, d) * inv_m
    diff = x - mean                                                     # mean replicated per-feature
    var = _fold_replicas(jnp.sum(diff * diff, axis=0, keepdims=True), fold, d) * inv_m
    inv_std = lax.rsqrt(var + eps)
    scale = gamma_ref[...].astype(jnp.float32) * inv_std
    shift = beta_ref[...].astype(jnp.float32) - mean * scale
    o_ref[...] = (x * scale + shift).astype(o_ref.dtype)


def _partial_stats_kernel(x_ref, sum_ref, sq_ref):
    # Accumulate per-feature sum / sum-of-squares for this split's row range
    # directly into the resident (1, 1, Dp) output blocks.
    i = pl.program_id(1)

    @pl.when(i == 0)
    def _():
        sum_ref[...] = jnp.zeros_like(sum_ref)
        sq_ref[...] = jnp.zeros_like(sq_ref)

    x = x_ref[...].astype(jnp.float32)                                  # (tm, Dp)
    sum_ref[...] += jnp.sum(x, axis=0, keepdims=True)[None]
    sq_ref[...] += jnp.sum(x * x, axis=0, keepdims=True)[None]


def _normalize_kernel(x_ref, scale_ref, shift_ref, o_ref):
    # Single FMA per element; scale/shift already fold in mean/inv_std/gamma/beta.
    o_ref[...] = (x_ref[...].astype(jnp.float32) * scale_ref[...]
                  + shift_ref[...]).astype(o_ref.dtype)


def _pick_row_tile(mf, dp, elem_bytes):
    """Largest multiple-of-8 row tile within the VMEM budget.

    Prefers a tile that divides mf exactly (no padding); otherwise returns the
    max tile plus the zero-padding needed (exact for the streaming stats).
    """
    max_rows = (_TILE_BYTES_BUDGET // max(dp * elem_bytes, 1)) // 8 * 8
    max_rows = max(8, min(max_rows, _MAX_TILE_ROWS))
    tm = max_rows
    while tm >= 8:
        if mf % tm == 0:
            return tm, 0
        tm -= 8
    tm = max_rows
    return tm, (-mf) % tm


@functools.partial(jax.jit, static_argnames=("eps",))
def normalization_forward(x, gamma, beta, eps=_EPS):
    """BatchNorm1d training-mode forward over x.reshape(-1, D), affine."""
    orig_shape = x.shape
    d = orig_shape[-1]
    x2d = x.reshape(-1, d)
    m = x2d.shape[0]

    # Lane-dense folding: fold f rows into the lane axis so the lane width is
    # a multiple of 128.
    if d < 128 and 128 % d == 0 and m % (128 // d) == 0:
        fold = 128 // d
    else:
        fold = 1
    mf = m // fold
    dp = d * fold

    xf = x2d.reshape(mf, dp)
    gamma_f = gamma.reshape(-1).astype(jnp.float32)
    beta_f = beta.reshape(-1).astype(jnp.float32)
    inv_m = 1.0 / m
    elem_bytes = max(jnp.dtype(x.dtype).itemsize, 4)  # kernels compute in f32

    vec_spec = pl.BlockSpec((1, dp), lambda i: (0, 0))

    if mf * dp * 4 <= _SMALL_FUSED_BYTES:
        # Small input: one fused single-tile kernel -> single HBM read,
        # centered variance.
        gamma_p = jnp.tile(gamma_f, fold).reshape(1, dp)
        beta_p = jnp.tile(beta_f, fold).reshape(1, dp)
        out = pl.pallas_call(
            functools.partial(_fused_kernel, fold=fold, d=d, inv_m=inv_m, eps=eps),
            out_shape=jax.ShapeDtypeStruct((mf, dp), x.dtype),
            grid_spec=pltpu.PrefetchScalarGridSpec(
                num_scalar_prefetch=0,
                grid=(1,),
                in_specs=[pl.BlockSpec((mf, dp), lambda i: (0, 0)),
                          vec_spec, vec_spec],
                out_specs=pl.BlockSpec((mf, dp), lambda i: (0, 0)),
            ),
            compiler_params=pltpu.CompilerParams(
                dimension_semantics=("arbitrary",),
                vmem_limit_bytes=_VMEM_LIMIT),
        )(xf, gamma_p, beta_p)
        return out.reshape(orig_shape)

    # ---- Streaming two-pass path ----
    tm, pad = _pick_row_tile(mf, dp, elem_bytes)
    xf_p = jnp.pad(xf, ((0, pad), (0, 0))) if pad else xf
    mf_p = mf + pad
    nt = mf_p // tm

    # Split the stats reduction across (up to) two TensorCores on v7x.
    split = 2 if (nt >= 2 and nt % 2 == 0) else 1
    nt_inner = nt // split

    row_spec = pl.BlockSpec((tm, dp), lambda i: (i, 0))
    part_spec = pl.BlockSpec((1, 1, dp), lambda c, i: (c, 0, 0))

    # Pass A: per-split partial per-feature sum / sum-of-squares.
    psum, psq = pl.pallas_call(
        _partial_stats_kernel,
        out_shape=(jax.ShapeDtypeStruct((split, 1, dp), jnp.float32),
                   jax.ShapeDtypeStruct((split, 1, dp), jnp.float32)),
        grid_spec=pltpu.PrefetchScalarGridSpec(
            num_scalar_prefetch=0,
            grid=(split, nt_inner),
            in_specs=[pl.BlockSpec((tm, dp),
                                   lambda c, i, n=nt_inner: (c * n + i, 0))],
            out_specs=(part_spec, part_spec)),
        compiler_params=pltpu.CompilerParams(
            dimension_semantics=("parallel", "arbitrary"),
            vmem_limit_bytes=_VMEM_LIMIT),
    )(xf_p)

    # Tiny O(D) finalize (fold split partials and lane replicas, build the
    # fused affine).  E[x^2] - mean^2 in f32 accumulation.
    # TODO(synk): can lose precision if |mean| >> std; a true centered
    # two-pass variance would need an extra sweep over x.
    total = jnp.sum(psum.reshape(-1, d), axis=0)
    total_sq = jnp.sum(psq.reshape(-1, d), axis=0)
    mean = total * inv_m
    var = jnp.maximum(total_sq * inv_m - mean * mean, 0.0)
    scale = gamma_f * lax.rsqrt(var + eps)
    shift = beta_f - mean * scale
    scale_p = jnp.tile(scale, fold).reshape(1, dp)
    shift_p = jnp.tile(shift, fold).reshape(1, dp)

    # Pass B: y = x * scale + shift; row tiles are independent ('parallel'
    # shards them across both TensorCores on v7x).
    out = pl.pallas_call(
        _normalize_kernel,
        out_shape=jax.ShapeDtypeStruct((mf_p, dp), x.dtype),
        grid_spec=pltpu.PrefetchScalarGridSpec(
            num_scalar_prefetch=0,
            grid=(nt,),
            in_specs=[row_spec, vec_spec, vec_spec],
            out_specs=row_spec),
        compiler_params=pltpu.CompilerParams(
            dimension_semantics=("parallel",),
            vmem_limit_bytes=_VMEM_LIMIT),
    )(xf_p, scale_p, shift_p)

    if pad:
        out = out[:mf]
    # TODO(synk): running_mean / running_var bookkeeping of BatchNorm1d is not
    # reproduced (it does not affect the training-mode forward output).
    return out.reshape(orig_shape)


def _reference(x, gamma, beta, eps=_EPS):
    d = x.shape[-1]
    x2d = x.reshape(-1, d).astype(jnp.float32)
    mean = jnp.mean(x2d, axis=0, keepdims=True)
    var = jnp.mean((x2d - mean) ** 2, axis=0, keepdims=True)
    y = (x2d - mean) / jnp.sqrt(var + eps) * gamma[None, :] + beta[None, :]
    return y.reshape(x.shape).astype(x.dtype)


if __name__ == "__main__":
    key = jax.random.PRNGKey(0)
    kx, kg, kb, kx2 = jax.random.split(key, 4)

    # Shapes implied by the transformer: (batch=2, seq=8, embed_dim=32).
    B, S, D = 2, 8, 32
    x = jax.random.normal(kx, (B, S, D), dtype=jnp.float32)
    gamma = 1.0 + 0.1 * jax.random.normal(kg, (D,), dtype=jnp.float32)
    beta = 0.1 * jax.random.normal(kb, (D,), dtype=jnp.float32)

    out = normalization_forward(x, gamma, beta)
    jax.block_until_ready(out)
    assert jnp.allclose(out, _reference(x, gamma, beta), atol=1e-5, rtol=1e-5), \
        "mismatch vs reference (fused path)"

    # Larger batch to exercise the split-parallel two-pass pipeline.
    x_big = jax.random.normal(kx2, (8, 4096, D), dtype=jnp.float32)
    out_big = normalization_forward(x_big, gamma, beta)
    jax.block_until_ready(out_big)
    assert jnp.allclose(out_big, _reference(x_big, gamma, beta),
                        atol=2e-4, rtol=2e-4), "mismatch vs reference (tiled path)"

    print("KERNEL_OK")
</pallas_src>

<mosaic_0001>
module attributes {stable_mosaic.version = 11 : i64} {
  func.func @_fused_kernel(%arg0: i32, %arg1: memref<4x128xf32, #tpu.memory_space<vmem>>, %arg2: memref<1x128xf32, #tpu.memory_space<vmem>>, %arg3: memref<1x128xf32, #tpu.memory_space<vmem>>, %arg4: memref<4x128xf32, #tpu.memory_space<vmem>>) attributes {dimension_semantics = [#tpu.dimension_semantics<arbitrary>], iteration_bounds = array<i64: 1>, scalar_prefetch = 0 : i64, scratch_operands = 0 : i64, tpu.core_type = #tpu.core_type<tc>, window_params = [{pipeline_mode = #tpu.pipeline_mode<synchronous>, transform_indices = @transform_0, window_bounds = array<i64: 4, 128>}, {pipeline_mode = #tpu.pipeline_mode<synchronous>, transform_indices = @transform_1, window_bounds = array<i64: 1, 128>}, {pipeline_mode = #tpu.pipeline_mode<synchronous>, transform_indices = @transform_2, window_bounds = array<i64: 1, 128>}, {pipeline_mode = #tpu.pipeline_mode<synchronous>, transform_indices = @transform_3, window_bounds = array<i64: 4, 128>}]} {
    %c0 = arith.constant 0 : index
    %c0_0 = arith.constant 0 : index
    %0 = vector.load %arg1[%c0, %c0_0] : memref<4x128xf32, #tpu.memory_space<vmem>>, vector<4x128xf32>
    %cst = arith.constant dense<0.000000e+00> : vector<128xf32>
    %1 = vector.multi_reduction <add>, %0, %cst [0] : vector<4x128xf32> to vector<128xf32>
    %2 = vector.shape_cast %1 : vector<128xf32> to vector<1x128xf32>
    %c32_i32 = arith.constant 32 : i32
    %3 = tpu.dynamic_rotate %2 by %c32_i32 dim 1 : vector<1x128xf32>, i32 -> vector<1x128xf32>
    %4 = arith.addf %2, %3 : vector<1x128xf32>
    %c64_i32 = arith.constant 64 : i32
    %5 = tpu.dynamic_rotate %2 by %c64_i32 dim 1 : vector<1x128xf32>, i32 -> vector<1x128xf32>
    %6 = arith.addf %4, %5 : vector<1x128xf32>
    %c96_i32 = arith.constant 96 : i32
    %7 = tpu.dynamic_rotate %2 by %c96_i32 dim 1 : vector<1x128xf32>, i32 -> vector<1x128xf32>
    %8 = arith.addf %6, %7 : vector<1x128xf32>
    %cst_1 = arith.constant 6.250000e-02 : f32
    %9 = vector.broadcast %cst_1 : f32 to vector<1x128xf32>
    %10 = arith.mulf %8, %9 : vector<1x128xf32>
    %11 = vector.broadcast %10 : vector<1x128xf32> to vector<4x128xf32>
    %12 = arith.subf %0, %11 : vector<4x128xf32>
    %13 = arith.mulf %12, %12 : vector<4x128xf32>
    %cst_2 = arith.constant dense<0.000000e+00> : vector<128xf32>
    %14 = vector.multi_reduction <add>, %13, %cst_2 [0] : vector<4x128xf32> to vector<128xf32>
    %15 = vector.shape_cast %14 : vector<128xf32> to vector<1x128xf32>
    %c32_i32_3 = arith.constant 32 : i32
    %16 = tpu.dynamic_rotate %15 by %c32_i32_3 dim 1 : vector<1x128xf32>, i32 -> vector<1x128xf32>
    %17 = arith.addf %15, %16 : vector<1x128xf32>
    %c64_i32_4 = arith.constant 64 : i32
    %18 = tpu.dynamic_rotate %15 by %c64_i32_4 dim 1 : vector<1x128xf32>, i32 -> vector<1x128xf32>
    %19 = arith.addf %17, %18 : vector<1x128xf32>
    %c96_i32_5 = arith.constant 96 : i32
    %20 = tpu.dynamic_rotate %15 by %c96_i32_5 dim 1 : vector<1x128xf32>, i32 -> vector<1x128xf32>
    %21 = arith.addf %19, %20 : vector<1x128xf32>
    %cst_6 = arith.constant 6.250000e-02 : f32
    %22 = vector.broadcast %cst_6 : f32 to vector<1x128xf32>
    %23 = arith.mulf %21, %22 : vector<1x128xf32>
    %cst_7 = arith.constant 9.99999974E-6 : f32
    %24 = vector.broadcast %cst_7 : f32 to vector<1x128xf32>
    %25 = arith.addf %23, %24 : vector<1x128xf32>
    %26 = math.rsqrt %25 : vector<1x128xf32>
    %c0_8 = arith.constant 0 : index
    %c0_9 = arith.constant 0 : index
    %27 = vector.load %arg2[%c0_8, %c0_9] : memref<1x128xf32, #tpu.memory_space<vmem>>, vector<1x128xf32>
    %28 = arith.mulf %27, %26 : vector<1x128xf32>
    %c0_10 = arith.constant 0 : index
    %c0_11 = arith.constant 0 : index
    %29 = vector.load %arg3[%c0_10, %c0_11] : memref<1x128xf32, #tpu.memory_space<vmem>>, vector<1x128xf32>
    %30 = arith.mulf %10, %28 : vector<1x128xf32>
    %31 = arith.subf %29, %30 : vector<1x128xf32>
    %32 = vector.broadcast %28 : vector<1x128xf32> to vector<4x128xf32>
    %33 = arith.mulf %0, %32 : vector<4x128xf32>
    %34 = vector.broadcast %31 : vector<1x128xf32> to vector<4x128xf32>
    %35 = arith.addf %33, %34 : vector<4x128xf32>
    %c0_12 = arith.constant 0 : index
    %c0_13 = arith.constant 0 : index
    %36 = vector.load %arg4[%c0_12, %c0_13] : memref<4x128xf32, #tpu.memory_space<vmem>>, vector<4x128xf32>
    tpu.vector_store %arg4[%c0_12, %c0_13], %35 {strides = array<i32>} : memref<4x128xf32, #tpu.memory_space<vmem>>, vector<4x128xf32>,
    return
  }
  func.func @transform_0(%arg0: i32) -> (i32, i32) {
    %c0_i32 = arith.constant 0 : i32
    %c0_i32_0 = arith.constant 0 : i32
    %c0_i32_1 = arith.constant 0 : i32
    return %c0_i32, %c0_i32_0 : i32, i32
  }
  func.func @transform_1(%arg0: i32) -> (i32, i32) {
    %c0_i32 = arith.constant 0 : i32
    %c0_i32_0 = arith.constant 0 : i32
    %c0_i32_1 = arith.constant 0 : i32
    return %c0_i32, %c0_i32_0 : i32, i32
  }
  func.func @transform_2(%arg0: i32) -> (i32, i32) {
    %c0_i32 = arith.constant 0 : i32
    %c0_i32_0 = arith.constant 0 : i32
    %c0_i32_1 = arith.constant 0 : i32
    return %c0_i32, %c0_i32_0 : i32, i32
  }
  func.func @transform_3(%arg0: i32) -> (i32, i32) {
    %c0_i32 = arith.constant 0 : i32
    %c0_i32_0 = arith.constant 0 : i32
    %c0_i32_1 = arith.constant 0 : i32
    return %c0_i32, %c0_i32_0 : i32, i32
  }
}

</mosaic_0001>

<llo_original>
// kernel: tile.13
$region0: #{tile.13}
  #allocation0 [shape = 's32[1]{0}', space=sflag, size = 0x4, scoped, tag = 'scoped memory for tile.13']
  %s0 = inlined_call_operand.vmem [shape: f32[32], index: 0, kind: input, shape index: {}]
  %s1 = inlined_call_operand.vmem [shape: f32[4,32], index: 1, kind: output, shape index: {}]
  // Predicated region
  $region2: #{tile.13} parent=0 // pred_check
    _
  $region3: #{tile.13} parent=0 // pred_check_branch
    %3 = sbr.rel (0) target = $region5
  $region4: #{tile.13} parent=0 // pred_region
    _
  $region5: #{tile.13} parent=0 // pred_fallthru
    _
  %v4 = vld [vmem:[%s0] ss:$0 sm:$0xff]
  %5 = vst [vmem:[%s1] sm:$0xf] %v4

// kernel: tile.14
$region0: #{tile.14}
  %s0 = inlined_call_operand.vmem [shape: f32[4,32], index: 0, kind: input, shape index: {}]
  %s1 = inlined_call_operand.vmem [shape: f32[1,128], index: 1, kind: output, shape index: {}]
  $region1: #{tile.14} parent=0
    #allocation0 [shape = 'u8[4096]{0}', space=vmem, size = 0x1000, scoped, tag = 'scoped mem for output reshape']
    #allocation1 [shape = 'u8[4096]{0}', space=vmem, size = 0x1000, scoped, tag = 'scoped mem for input reshape']
    %s3 = sshllo.u32 0, 4
    %v4 = vld [vmem:[%s0] sm:%s3]
    %5 = vst [vmem:[#allocation1] sm:%s3] %v4
    %v6 = vld [vmem:[#allocation1] sm:$0x1]
    %vm7 = vcmask 261120
    %8 = vst.msk [vmem:[#allocation0] sm:$0x1] %vm7, %v6
    %s9 = scalar_lea.vmem [#allocation1], 3
    %v10 = vld [vmem:[%s9] sm:$0x1]
    %11 = vrot.lane.b32.xlu0 %v10, 96
    %v12 = vpop.permute.xlu0 %11
    %vm13 = vcmask 1048320
    %14 = vst.msk [vmem:[#allocation0] sm:$0x1] %vm13, %v12
    %s15 = scalar_lea.vmem [#allocation1], 2
    %v16 = vld [vmem:[%s15] sm:$0x1]
    %17 = vrot.lane.b32.xlu0 %v16, 64
    %v18 = vpop.permute.xlu0 %17
    %vm19 = vcmask 785920
    %20 = vst.msk [vmem:[#allocation0] sm:$0x1] %vm19, %v18
    %s21 = scalar_lea.vmem [#allocation1], 1
    %v22 = vld [vmem:[%s21] sm:$0x1]
    %23 = vrot.lane.b32.xlu0 %v22, 32
    %v24 = vpop.permute.xlu0 %23
    %vm25 = vcmask 523520
    %26 = vst.msk [vmem:[#allocation0] sm:$0x1] %vm25, %v24
    %s28 = sshllo.u32 0, 1
    %v30 = vld [vmem:[#allocation0] sm:%s28]
    %s31 = sshllo.u32 0, 1
    %32 = vst [vmem:[%s1] sm:%s31] %v30

// kernel: normalization_forward.1
$region0: #{normalization_forward.1}
  #allocation0 [shape = 'u32[]', space=smem, size = 0x4, offset = 0x4, fixed_abs, tag = 'smem constant byte address 0x4 - core index']
  #allocation1 [shape = 'u32[144,128]{1,0:T(1,128)}', space=vmem, size = 0x12000, scoped, tag = 'internal scratch']
  %s0 = inlined_call_operand.vmem [shape: f32[4,128], index: 0, kind: input, shape index: {}]
  %s1 = inlined_call_operand.vmem [shape: f32[1,128], index: 1, kind: input, shape index: {}]
  %s2 = inlined_call_operand.vmem [shape: f32[1,128], index: 2, kind: input, shape index: {}]
  %s3 = inlined_call_operand.vmem [shape: f32[4,128], index: 3, kind: output, shape index: {}]
  %s4 = sld [smem:[#allocation0]]
  $region22: #{normalization_forward.1} parent=0
    _
  %s6 = ssub.s32 1, %s4
  %s7 = scalar_select 0, %s6, %s4
  // Predicated region
  $region2: #{normalization_forward.1} parent=0 // pred_check
    _
  $region3: #{normalization_forward.1} parent=0 // pred_check_branch
    %9 = sbr.rel (0) target = $region5
  $region4: #{normalization_forward.1} parent=0 // pred_region
    _
  $region5: #{normalization_forward.1} parent=0 // pred_fallthru
    _
  // Predicated region
  $region6: #{normalization_forward.1} parent=0 // pred_check
    _
  $region7: #{normalization_forward.1} parent=0 // pred_check_branch
    %11 = sbr.rel (0) target = $region9
  $region8: #{normalization_forward.1} parent=0 // pred_region
    _
  $region9: #{normalization_forward.1} parent=0 // pred_fallthru
    _
  // Predicated region
  $region10: #{normalization_forward.1} parent=0 // pred_check
    _
  $region11: #{normalization_forward.1} parent=0 // pred_check_branch
    %13 = sbr.rel (0) target = $region13
  $region12: #{normalization_forward.1} parent=0 // pred_region
    _
  $region13: #{normalization_forward.1} parent=0 // pred_fallthru
    _
  %v14 = vld [vmem:[%s0] sm:$0xf]
  %vm15 = vcmask 1043456
  %v16 = vsel %vm15, %v14, 0.0
  %v17 = vrot.slane %v16, 4
  %v18 = vadd.f32 %v16, %v17
  %v19 = vrot.slane %v18, 2
  %v20 = vadd.f32 %v18, %v19
  %v21 = vrot.slane %v20, 1
  %v22 = vadd.f32 %v20, %v21
  %23 = vrot.lane.b32.xlu0 %v22, 32
  %v24 = vpop.permute.xlu0 %23
  %v25 = vadd.f32 %v22, %v24
  %26 = vrot.lane.b32.xlu0 %v22, 64
  %v27 = vpop.permute.xlu0 %26
  %v28 = vadd.f32 %v25, %v27
  %29 = vrot.lane.b32.xlu0 %v22, 96
  %v30 = vpop.permute.xlu0 %29
  %v31 = vadd.f32 %v28, %v30
  %v32 = vmul.f32 %v31, 0.0625
  %v33 = vlaneseq
  %v34 = vshrl.u32 %v33, 7
  %v35 = vsub.s32 0, %v34
  %v36 = vrot.slane %v32, %v35
  %v37 = vsub.f32 %v14, %v36
  %v38 = vmul.f32 %v37, %v37
  %v39 = vsel %vm15, %v38, 0.0
  %v40 = vrot.slane %v39, 4
  %v41 = vadd.f32 %v39, %v40
  %v42 = vrot.slane %v41, 2
  %v43 = vadd.f32 %v41, %v42
  %v44 = vrot.slane %v43, 1
  %v45 = vadd.f32 %v43, %v44
  %46 = vrot.lane.b32.xlu0 %v45, 32
  %v47 = vpop.permute.xlu0 %46
  %v48 = vadd.f32 %v45, %v47
  %49 = vrot.lane.b32.xlu0 %v45, 64
  %v50 = vpop.permute.xlu0 %49
  %v51 = vadd.f32 %v48, %v50
  %52 = vrot.lane.b32.xlu0 %v45, 96
  %v53 = vpop.permute.xlu0 %52
  %v54 = vadd.f32 %v51, %v53
  %v55 = vmul.f32 %v54, 0.0625
  %v56 = vadd.f32 %v55, 1e-05
  %v57 = vrsqrt.pop %v56
  %v58 = vld [vmem:[%s1] sm:$0x1]
  %v59 = vmul.f32 %v58, %v57
  %v60 = vld [vmem:[%s2] sm:$0x1]
  %v61 = vmul.f32 %v32, %v59
  %v62 = vsub.f32 %v60, %v61
  %v64 = vlaneseq
  %v65 = vshrl.u32 %v64, 7
  %v66 = vsub.s32 0, %v65
  %v67 = vrot.slane %v59, %v66
  %v69 = vmul.f32 %v14, %v67
  %v71 = vlaneseq
  %v72 = vshrl.u32 %v71, 7
  %v73 = vsub.s32 0, %v72
  %v74 = vrot.slane %v62, %v73
  %v76 = vadd.f32 %v69, %v74
  %77 = vst [vmem:[%s3] sm:$0xf] %v76
  // Predicated region
  $region14: #{normalization_forward.1} parent=0 // pred_check
    _
  $region15: #{normalization_forward.1} parent=0 // pred_check_branch
    %79 = sbr.rel (0) target = $region17
  $region16: #{normalization_forward.1} parent=0 // pred_region
    _
  $region17: #{normalization_forward.1} parent=0 // pred_fallthru
    _
  // Predicated region
  $region18: #{normalization_forward.1} parent=0 // pred_check
    _
  $region19: #{normalization_forward.1} parent=0 // pred_check_branch
    %81 = sbr.rel (0) target = $region21
  $region20: #{normalization_forward.1} parent=0 // pred_region
    _
  $region21: #{normalization_forward.1} parent=0 // pred_fallthru
    _

</llo_original>
